<compile_context>
chip_gen: v7x
topology: tpu7x:2x2x1
jax: 0.10.0
libtpu: 0.0.40
codegen_flags: <defaults>
</compile_context>

<pallas_src>
import jax
import jax.numpy as jnp
from jax.experimental import pallas as pl
from jax.experimental.pallas import tpu as pltpu  # noqa: F401  (TPU backend)


# ----------------------------- Pallas kernel --------------------------------

def _make_dino_loss_kernel(n_student, n_teacher, batch,
                           student_temp, teacher_temp, center_momentum):
    """Build a fused loss kernel specialized for the crop counts / batch."""
    n_pairs = n_teacher * n_student - min(n_teacher, n_student)
    inv_s_temp = 1.0 / float(student_temp)
    inv_t_temp = 1.0 / float(teacher_temp)
    momentum = float(center_momentum)

    def kernel(*refs):
        student_refs = refs[:n_student]
        teacher_refs = refs[n_student:n_student + n_teacher]
        center_ref = refs[n_student + n_teacher]
        loss_ref = refs[n_student + n_teacher + 1]
        new_center_ref = refs[n_student + n_teacher + 2]

        center = center_ref[...]                                    # (1, K)

        # Teacher: centered, temperature-scaled softmax (K on the lane axis).
        t_sm = []
        for r in teacher_refs:
            logits = (r[...] - center) * inv_t_temp                 # (B, K)
            logits = logits - jnp.max(logits, axis=-1, keepdims=True)
            e = jnp.exp(logits)
            t_sm.append(e / jnp.sum(e, axis=-1, keepdims=True))

        # Student: temperature-scaled log-softmax.
        s_lsm = []
        for r in student_refs:
            logits = r[...] * inv_s_temp                            # (B, K)
            logits = logits - jnp.max(logits, axis=-1, keepdims=True)
            lse = jnp.log(jnp.sum(jnp.exp(logits), axis=-1, keepdims=True))
            s_lsm.append(logits - lse)

        # Sum over ALL (t, s) pairs factorizes into <sum_t T, sum_s S>;
        # then subtract the diagonal (t_ix == s_ix) terms that PyTorch skips.
        t_tot = t_sm[0]
        for a in t_sm[1:]:
            t_tot = t_tot + a                                       # (B, K)
        s_tot = s_lsm[0]
        for a in s_lsm[1:]:
            s_tot = s_tot + a                                       # (B, K)

        full = jnp.sum(t_tot * s_tot, axis=-1, keepdims=True)       # (B, 1)
        diag = jnp.zeros_like(full)
        for i in range(min(n_teacher, n_student)):
            diag = diag + jnp.sum(t_sm[i] * s_lsm[i], axis=-1, keepdims=True)

        per_sample = -(full - diag)                                 # (B, 1)
        loss_ref[...] = jnp.sum(per_sample, axis=0, keepdims=True) * (
            1.0 / (batch * n_pairs))                                # (1, 1)

        # Center EMA update on the RAW teacher logits (as in update_center).
        bc = jnp.sum(teacher_refs[0][...], axis=0, keepdims=True)   # (1, K)
        for r in teacher_refs[1:]:
            bc = bc + jnp.sum(r[...], axis=0, keepdims=True)
        bc = bc * (1.0 / (n_teacher * batch))
        new_center_ref[...] = center * momentum + bc * (1.0 - momentum)

    return kernel


# ------------------------------ wrapper --------------------------------------

def dino_loss(student_output, teacher_output, center, *,
              student_temp=0.1, teacher_temp=0.04, center_momentum=0.9):
    """JAX/Pallas equivalent of Loss.forward.

    Returns (scalar_loss, new_center); new_center is the updated EMA buffer.
    """
    student_output = list(student_output)
    teacher_output = list(teacher_output)
    n_s, n_t = len(student_output), len(teacher_output)
    b, k = student_output[0].shape

    kernel = _make_dino_loss_kernel(n_s, n_t, b,
                                    student_temp, teacher_temp, center_momentum)

    in_specs = (
        [pl.BlockSpec((b, k), lambda: (0, 0)) for _ in range(n_s + n_t)]
        + [pl.BlockSpec((1, k), lambda: (0, 0))]
    )
    out_shape = (
        jax.ShapeDtypeStruct((1, 1), jnp.float32),   # loss
        jax.ShapeDtypeStruct((1, k), jnp.float32),   # updated center
    )
    out_specs = (
        pl.BlockSpec((1, 1), lambda: (0, 0)),
        pl.BlockSpec((1, k), lambda: (0, 0)),
    )

    loss2d, new_center = pl.pallas_call(
        kernel,
        out_shape=out_shape,
        in_specs=in_specs,
        out_specs=out_specs,
    )(*student_output, *teacher_output, center)
    return loss2d[0, 0], new_center


# ------------------------------- main -----------------------------------------

if __name__ == "__main__":
    B = 2            # samples per crop
    K = 128          # out_dim (lane-dense)
    N_STUDENT = 4    # student processes all crops
    N_TEACHER = 2    # teacher processes the two global crops
    STUDENT_TEMP, TEACHER_TEMP, MOMENTUM = 0.1, 0.04, 0.9

    key = jax.random.PRNGKey(0)
    ks = jax.random.split(key, N_STUDENT + N_TEACHER)
    student_output = [jax.random.normal(ks[i], (B, K), jnp.float32)
                      for i in range(N_STUDENT)]
    teacher_output = [jax.random.normal(ks[N_STUDENT + i], (B, K), jnp.float32)
                      for i in range(N_TEACHER)]
    center = jnp.zeros((1, K), jnp.float32)   # the registered buffer

    loss, new_center = dino_loss(
        student_output, teacher_output, center,
        student_temp=STUDENT_TEMP, teacher_temp=TEACHER_TEMP,
        center_momentum=MOMENTUM)
    loss = jax.block_until_ready(loss)
    new_center = jax.block_until_ready(new_center)
    assert loss.shape == () and new_center.shape == (1, K)

    # ---------------- pure-JAX reference of the whole forward ----------------
    def ref_forward(student_output, teacher_output, center):
        s_sm = [jax.nn.log_softmax(s / STUDENT_TEMP, axis=-1)
                for s in student_output]
        t_sm = [jax.nn.softmax((t - center) / TEACHER_TEMP, axis=-1)
                for t in teacher_output]
        total, n_terms = 0.0, 0
        for t_ix, t in enumerate(t_sm):
            for s_ix, s in enumerate(s_sm):
                if t_ix == s_ix:
                    continue
                total = total + jnp.mean(jnp.sum(-t * s, axis=-1))
                n_terms += 1
        total = total / n_terms
        bc = jnp.mean(jnp.concatenate(teacher_output, axis=0),
                      axis=0, keepdims=True)
        new_c = center * MOMENTUM + bc * (1.0 - MOMENTUM)
        return total, new_c

    loss_ref, new_center_ref_val = ref_forward(student_output, teacher_output,
                                               center)
    assert jnp.allclose(loss, loss_ref, atol=1e-4, rtol=1e-4), (loss, loss_ref)
    assert jnp.allclose(new_center, new_center_ref_val, atol=1e-5, rtol=1e-5)

    print("KERNEL_OK")
</pallas_src>

<mosaic_0001>
module attributes {stable_mosaic.version = 11 : i64} {
  func.func @kernel(%arg0: memref<2x128xf32, #tpu.memory_space<vmem>>, %arg1: memref<2x128xf32, #tpu.memory_space<vmem>>, %arg2: memref<2x128xf32, #tpu.memory_space<vmem>>, %arg3: memref<2x128xf32, #tpu.memory_space<vmem>>, %arg4: memref<2x128xf32, #tpu.memory_space<vmem>>, %arg5: memref<2x128xf32, #tpu.memory_space<vmem>>, %arg6: memref<1x128xf32, #tpu.memory_space<vmem>>, %arg7: memref<1x1xf32, #tpu.memory_space<vmem>>, %arg8: memref<1x128xf32, #tpu.memory_space<vmem>>) attributes {dimension_semantics = [], scalar_prefetch = 0 : i64, scratch_operands = 0 : i64, tpu.core_type = #tpu.core_type<tc>} {
    %c0 = arith.constant 0 : index
    %c0_0 = arith.constant 0 : index
    %0 = vector.load %arg6[%c0, %c0_0] : memref<1x128xf32, #tpu.memory_space<vmem>>, vector<1x128xf32>
    %c0_1 = arith.constant 0 : index
    %c0_2 = arith.constant 0 : index
    %1 = vector.load %arg4[%c0_1, %c0_2] : memref<2x128xf32, #tpu.memory_space<vmem>>, vector<2x128xf32>
    %2 = vector.broadcast %0 : vector<1x128xf32> to vector<2x128xf32>
    %3 = arith.subf %1, %2 : vector<2x128xf32>
    %cst = arith.constant 2.500000e+01 : f32
    %4 = vector.broadcast %cst : f32 to vector<2x128xf32>
    %5 = arith.mulf %3, %4 : vector<2x128xf32>
    %cst_3 = arith.constant dense<0xFF800000> : vector<2xf32>
    %6 = vector.multi_reduction <maximumf>, %5, %cst_3 [1] : vector<2x128xf32> to vector<2xf32>
    %7 = vector.shape_cast %6 : vector<2xf32> to vector<2x1xf32>
    %8 = vector.broadcast %7 : vector<2x1xf32> to vector<2x128xf32>
    %9 = arith.subf %5, %8 : vector<2x128xf32>
    %10 = math.exp %9 : vector<2x128xf32>
    %cst_4 = arith.constant dense<0.000000e+00> : vector<2xf32>
    %11 = vector.multi_reduction <add>, %10, %cst_4 [1] : vector<2x128xf32> to vector<2xf32>
    %12 = vector.shape_cast %11 : vector<2xf32> to vector<2x1xf32>
    %13 = vector.broadcast %12 : vector<2x1xf32> to vector<2x128xf32>
    %14 = arith.divf %10, %13 : vector<2x128xf32>
    %c0_5 = arith.constant 0 : index
    %c0_6 = arith.constant 0 : index
    %15 = vector.load %arg5[%c0_5, %c0_6] : memref<2x128xf32, #tpu.memory_space<vmem>>, vector<2x128xf32>
    %16 = vector.broadcast %0 : vector<1x128xf32> to vector<2x128xf32>
    %17 = arith.subf %15, %16 : vector<2x128xf32>
    %cst_7 = arith.constant 2.500000e+01 : f32
    %18 = vector.broadcast %cst_7 : f32 to vector<2x128xf32>
    %19 = arith.mulf %17, %18 : vector<2x128xf32>
    %cst_8 = arith.constant dense<0xFF800000> : vector<2xf32>
    %20 = vector.multi_reduction <maximumf>, %19, %cst_8 [1] : vector<2x128xf32> to vector<2xf32>
    %21 = vector.shape_cast %20 : vector<2xf32> to vector<2x1xf32>
    %22 = vector.broadcast %21 : vector<2x1xf32> to vector<2x128xf32>
    %23 = arith.subf %19, %22 : vector<2x128xf32>
    %24 = math.exp %23 : vector<2x128xf32>
    %cst_9 = arith.constant dense<0.000000e+00> : vector<2xf32>
    %25 = vector.multi_reduction <add>, %24, %cst_9 [1] : vector<2x128xf32> to vector<2xf32>
    %26 = vector.shape_cast %25 : vector<2xf32> to vector<2x1xf32>
    %27 = vector.broadcast %26 : vector<2x1xf32> to vector<2x128xf32>
    %28 = arith.divf %24, %27 : vector<2x128xf32>
    %c0_10 = arith.constant 0 : index
    %c0_11 = arith.constant 0 : index
    %29 = vector.load %arg0[%c0_10, %c0_11] : memref<2x128xf32, #tpu.memory_space<vmem>>, vector<2x128xf32>
    %cst_12 = arith.constant 1.000000e+01 : f32
    %30 = vector.broadcast %cst_12 : f32 to vector<2x128xf32>
    %31 = arith.mulf %29, %30 : vector<2x128xf32>
    %cst_13 = arith.constant dense<0xFF800000> : vector<2xf32>
    %32 = vector.multi_reduction <maximumf>, %31, %cst_13 [1] : vector<2x128xf32> to vector<2xf32>
    %33 = vector.shape_cast %32 : vector<2xf32> to vector<2x1xf32>
    %34 = vector.broadcast %33 : vector<2x1xf32> to vector<2x128xf32>
    %35 = arith.subf %31, %34 : vector<2x128xf32>
    %36 = math.exp %35 : vector<2x128xf32>
    %cst_14 = arith.constant dense<0.000000e+00> : vector<2xf32>
    %37 = vector.multi_reduction <add>, %36, %cst_14 [1] : vector<2x128xf32> to vector<2xf32>
    %38 = vector.shape_cast %37 : vector<2xf32> to vector<2x1xf32>
    %39 = math.log %38 : vector<2x1xf32>
    %40 = vector.broadcast %39 : vector<2x1xf32> to vector<2x128xf32>
    %41 = arith.subf %35, %40 : vector<2x128xf32>
    %c0_15 = arith.constant 0 : index
    %c0_16 = arith.constant 0 : index
    %42 = vector.load %arg1[%c0_15, %c0_16] : memref<2x128xf32, #tpu.memory_space<vmem>>, vector<2x128xf32>
    %cst_17 = arith.constant 1.000000e+01 : f32
    %43 = vector.broadcast %cst_17 : f32 to vector<2x128xf32>
    %44 = arith.mulf %42, %43 : vector<2x128xf32>
    %cst_18 = arith.constant dense<0xFF800000> : vector<2xf32>
    %45 = vector.multi_reduction <maximumf>, %44, %cst_18 [1] : vector<2x128xf32> to vector<2xf32>
    %46 = vector.shape_cast %45 : vector<2xf32> to vector<2x1xf32>
    %47 = vector.broadcast %46 : vector<2x1xf32> to vector<2x128xf32>
    %48 = arith.subf %44, %47 : vector<2x128xf32>
    %49 = math.exp %48 : vector<2x128xf32>
    %cst_19 = arith.constant dense<0.000000e+00> : vector<2xf32>
    %50 = vector.multi_reduction <add>, %49, %cst_19 [1] : vector<2x128xf32> to vector<2xf32>
    %51 = vector.shape_cast %50 : vector<2xf32> to vector<2x1xf32>
    %52 = math.log %51 : vector<2x1xf32>
    %53 = vector.broadcast %52 : vector<2x1xf32> to vector<2x128xf32>
    %54 = arith.subf %48, %53 : vector<2x128xf32>
    %c0_20 = arith.constant 0 : index
    %c0_21 = arith.constant 0 : index
    %55 = vector.load %arg2[%c0_20, %c0_21] : memref<2x128xf32, #tpu.memory_space<vmem>>, vector<2x128xf32>
    %cst_22 = arith.constant 1.000000e+01 : f32
    %56 = vector.broadcast %cst_22 : f32 to vector<2x128xf32>
    %57 = arith.mulf %55, %56 : vector<2x128xf32>
    %cst_23 = arith.constant dense<0xFF800000> : vector<2xf32>
    %58 = vector.multi_reduction <maximumf>, %57, %cst_23 [1] : vector<2x128xf32> to vector<2xf32>
    %59 = vector.shape_cast %58 : vector<2xf32> to vector<2x1xf32>
    %60 = vector.broadcast %59 : vector<2x1xf32> to vector<2x128xf32>
    %61 = arith.subf %57, %60 : vector<2x128xf32>
    %62 = math.exp %61 : vector<2x128xf32>
    %cst_24 = arith.constant dense<0.000000e+00> : vector<2xf32>
    %63 = vector.multi_reduction <add>, %62, %cst_24 [1] : vector<2x128xf32> to vector<2xf32>
    %64 = vector.shape_cast %63 : vector<2xf32> to vector<2x1xf32>
    %65 = math.log %64 : vector<2x1xf32>
    %66 = vector.broadcast %65 : vector<2x1xf32> to vector<2x128xf32>
    %67 = arith.subf %61, %66 : vector<2x128xf32>
    %c0_25 = arith.constant 0 : index
    %c0_26 = arith.constant 0 : index
    %68 = vector.load %arg3[%c0_25, %c0_26] : memref<2x128xf32, #tpu.memory_space<vmem>>, vector<2x128xf32>
    %cst_27 = arith.constant 1.000000e+01 : f32
    %69 = vector.broadcast %cst_27 : f32 to vector<2x128xf32>
    %70 = arith.mulf %68, %69 : vector<2x128xf32>
    %cst_28 = arith.constant dense<0xFF800000> : vector<2xf32>
    %71 = vector.multi_reduction <maximumf>, %70, %cst_28 [1] : vector<2x128xf32> to vector<2xf32>
    %72 = vector.shape_cast %71 : vector<2xf32> to vector<2x1xf32>
    %73 = vector.broadcast %72 : vector<2x1xf32> to vector<2x128xf32>
    %74 = arith.subf %70, %73 : vector<2x128xf32>
    %75 = math.exp %74 : vector<2x128xf32>
    %cst_29 = arith.constant dense<0.000000e+00> : vector<2xf32>
    %76 = vector.multi_reduction <add>, %75, %cst_29 [1] : vector<2x128xf32> to vector<2xf32>
    %77 = vector.shape_cast %76 : vector<2xf32> to vector<2x1xf32>
    %78 = math.log %77 : vector<2x1xf32>
    %79 = vector.broadcast %78 : vector<2x1xf32> to vector<2x128xf32>
    %80 = arith.subf %74, %79 : vector<2x128xf32>
    %81 = arith.addf %14, %28 : vector<2x128xf32>
    %82 = arith.addf %41, %54 : vector<2x128xf32>
    %83 = arith.addf %82, %67 : vector<2x128xf32>
    %84 = arith.addf %83, %80 : vector<2x128xf32>
    %85 = arith.mulf %81, %84 : vector<2x128xf32>
    %cst_30 = arith.constant dense<0.000000e+00> : vector<2xf32>
    %86 = vector.multi_reduction <add>, %85, %cst_30 [1] : vector<2x128xf32> to vector<2xf32>
    %87 = vector.shape_cast %86 : vector<2xf32> to vector<2x1xf32>
    %cst_31 = arith.constant 0.000000e+00 : f32
    %88 = vector.broadcast %cst_31 : f32 to vector<2x1xf32>
    %89 = arith.mulf %14, %41 : vector<2x128xf32>
    %cst_32 = arith.constant dense<0.000000e+00> : vector<2xf32>
    %90 = vector.multi_reduction <add>, %89, %cst_32 [1] : vector<2x128xf32> to vector<2xf32>
    %91 = vector.shape_cast %90 : vector<2xf32> to vector<2x1xf32>
    %92 = arith.addf %88, %91 : vector<2x1xf32>
    %93 = arith.mulf %28, %54 : vector<2x128xf32>
    %cst_33 = arith.constant dense<0.000000e+00> : vector<2xf32>
    %94 = vector.multi_reduction <add>, %93, %cst_33 [1] : vector<2x128xf32> to vector<2xf32>
    %95 = vector.shape_cast %94 : vector<2xf32> to vector<2x1xf32>
    %96 = arith.addf %92, %95 : vector<2x1xf32>
    %97 = arith.subf %87, %96 : vector<2x1xf32>
    %cst_34 = arith.constant 0.000000e+00 : f32
    %98 = vector.broadcast %cst_34 : f32 to vector<2x1xf32>
    %99 = arith.subf %98, %97 : vector<2x1xf32>
    %cst_35 = arith.constant dense<0.000000e+00> : vector<1xf32>
    %100 = vector.multi_reduction <add>, %99, %cst_35 [0] : vector<2x1xf32> to vector<1xf32>
    %101 = vector.shape_cast %100 : vector<1xf32> to vector<1x1xf32>
    %cst_36 = arith.constant 0.0833333358 : f32
    %102 = vector.broadcast %cst_36 : f32 to vector<1x1xf32>
    %103 = arith.mulf %101, %102 : vector<1x1xf32>
    %c0_37 = arith.constant 0 : index
    %c0_38 = arith.constant 0 : index
    %104 = vector.load %arg7[%c0_37, %c0_38] : memref<1x1xf32, #tpu.memory_space<vmem>>, vector<1x1xf32>
    tpu.vector_store %arg7[%c0_37, %c0_38], %103 {strides = array<i32>} : memref<1x1xf32, #tpu.memory_space<vmem>>, vector<1x1xf32>,
    %c0_39 = arith.constant 0 : index
    %c0_40 = arith.constant 0 : index
    %105 = vector.load %arg4[%c0_39, %c0_40] : memref<2x128xf32, #tpu.memory_space<vmem>>, vector<2x128xf32>
    %cst_41 = arith.constant dense<0.000000e+00> : vector<128xf32>
    %106 = vector.multi_reduction <add>, %105, %cst_41 [0] : vector<2x128xf32> to vector<128xf32>
    %107 = vector.shape_cast %106 : vector<128xf32> to vector<1x128xf32>
    %c0_42 = arith.constant 0 : index
    %c0_43 = arith.constant 0 : index
    %108 = vector.load %arg5[%c0_42, %c0_43] : memref<2x128xf32, #tpu.memory_space<vmem>>, vector<2x128xf32>
    %cst_44 = arith.constant dense<0.000000e+00> : vector<128xf32>
    %109 = vector.multi_reduction <add>, %108, %cst_44 [0] : vector<2x128xf32> to vector<128xf32>
    %110 = vector.shape_cast %109 : vector<128xf32> to vector<1x128xf32>
    %111 = arith.addf %107, %110 : vector<1x128xf32>
    %cst_45 = arith.constant 2.500000e-01 : f32
    %112 = vector.broadcast %cst_45 : f32 to vector<1x128xf32>
    %113 = arith.mulf %111, %112 : vector<1x128xf32>
    %cst_46 = arith.constant 0.899999976 : f32
    %114 = vector.broadcast %cst_46 : f32 to vector<1x128xf32>
    %115 = arith.mulf %0, %114 : vector<1x128xf32>
    %cst_47 = arith.constant 1.000000e-01 : f32
    %116 = vector.broadcast %cst_47 : f32 to vector<1x128xf32>
    %117 = arith.mulf %113, %116 : vector<1x128xf32>
    %118 = arith.addf %115, %117 : vector<1x128xf32>
    %c0_48 = arith.constant 0 : index
    %c0_49 = arith.constant 0 : index
    %119 = vector.load %arg8[%c0_48, %c0_49] : memref<1x128xf32, #tpu.memory_space<vmem>>, vector<1x128xf32>
    tpu.vector_store %arg8[%c0_48, %c0_49], %118 {strides = array<i32>} : memref<1x128xf32, #tpu.memory_space<vmem>>, vector<1x128xf32>,
    return
  }
}

</mosaic_0001>

<llo_original>
// kernel: tpu_custom_call.1
$region0: #{tpu_custom_call.1}
  #allocation0 [shape = 'u32[]', space=smem, size = 0x4, offset = 0x4, fixed_abs, tag = 'smem constant byte address 0x4 - core index']
  #allocation1 [shape = 'u32[144,128]{1,0:T(1,128)}', space=vmem, size = 0x12000, scoped, tag = 'internal scratch']
  %s0 = inlined_call_operand.hbm [shape: f32[2,128], index: 0, kind: input, shape index: {}]
  %s1 = inlined_call_operand.vmem [shape: f32[2,128], index: 1, kind: input, shape index: {}]
  %s2 = inlined_call_operand.vmem [shape: f32[2,128], index: 2, kind: input, shape index: {}]
  %s3 = inlined_call_operand.vmem [shape: f32[2,128], index: 3, kind: input, shape index: {}]
  %s4 = inlined_call_operand.vmem [shape: f32[2,128], index: 4, kind: input, shape index: {}]
  %s5 = inlined_call_operand.vmem [shape: f32[2,128], index: 5, kind: input, shape index: {}]
  %s6 = inlined_call_operand.vmem [shape: f32[1,128], index: 6, kind: input, shape index: {}]
  %s7 = inlined_call_operand.hbm [shape: f32[1,1], index: 7, kind: output, shape index: {0}]
  %s8 = inlined_call_operand.hbm [shape: f32[1,128], index: 8, kind: output, shape index: {1}]
  %9 = xla_tuple %s7, %s8
  %s10 = sld [smem:[#allocation0]]
  $region50: #{tpu_custom_call.1} parent=0
    _
  %s12 = ssub.s32 1, %s10
  %s13 = scalar_select 0, %s12, %s10
  $region1: #{tpu_custom_call.1} parent=0
    #allocation2 [shape = 'u8[1024]{0}', space=vmem, size = 0x400, scoped, tag = 'input window, operand 0, single buffered']
    #allocation3 [shape = 's32[1]{0}', space=sflag, size = 0x4, scoped, tag = 'scoped memory for tpu_custom_call.1']
    #allocation4 [shape = 's32[1]{0}', space=sflag, size = 0x4, scoped, tag = 'scoped memory for tpu_custom_call.1']
    #allocation5 [shape = 'u8[512]{0}', space=vmem, size = 0x400, scoped, tag = 'output window, operand 0, single buffered']
    #allocation6 [shape = 'u8[512]{0}', space=vmem, size = 0x400, scoped, tag = 'output window, operand 1, single buffered']
    #allocation7 [shape = 's32[1]{0}', space=sflag, size = 0x4, scoped, tag = 'scoped memory for tpu_custom_call.1']
    %14 = vsyncpa [#allocation3], 0
    %15 = vsyncpa [#allocation4], 0
    %16 = vsyncpa [#allocation7], 0
    // Predicated region
    $region2: #{tpu_custom_call.1} parent=1 // pred_check
      _
    $region3: #{tpu_custom_call.1} parent=1 // pred_check_branch
      %18 = sbr.rel (0) target = $region5
    $region4: #{tpu_custom_call.1} parent=1 // pred_region
      %s20 = ssub.s32 32, 32
      %21 = vsyncadd [#allocation3], %s20
      %s23 = sshll.u32 [#allocation2], 4
      %s24 = int_to_ptr.vmem [resolvable:$true] %s23
      %26 = dma.hbm_to_vmem [thread:$0]  %s0, 32, %s24, [#allocation3]
    $region5: #{tpu_custom_call.1} parent=1 // pred_fallthru
      _
    // Predicated region
    $region6: #{tpu_custom_call.1} parent=1 // pred_check
      _
    $region7: #{tpu_custom_call.1} parent=1 // pred_check_branch
      %28 = sbr.rel (0) target = $region9
    $region8: #{tpu_custom_call.1} parent=1 // pred_region
      _
    $region9: #{tpu_custom_call.1} parent=1 // pred_fallthru
      _
    // Predicated region
    $region10: #{tpu_custom_call.1} parent=1 // pred_check
      _
    $region11: #{tpu_custom_call.1} parent=1 // pred_check_branch
      %30 = sbr.rel (0) target = $region13
    $region12: #{tpu_custom_call.1} parent=1 // pred_region
      _
    $region13: #{tpu_custom_call.1} parent=1 // pred_fallthru
      _
    // Predicated region
    $region14: #{tpu_custom_call.1} parent=1 // pred_check
      _
    $region15: #{tpu_custom_call.1} parent=1 // pred_check_branch
      %32 = sbr.rel (0) target = $region17
    $region16: #{tpu_custom_call.1} parent=1 // pred_region
      _
    $region17: #{tpu_custom_call.1} parent=1 // pred_fallthru
      _
    // Predicated region
    $region18: #{tpu_custom_call.1} parent=1 // pred_check
      _
    $region19: #{tpu_custom_call.1} parent=1 // pred_check_branch
      %34 = sbr.rel (0) target = $region21
    $region20: #{tpu_custom_call.1} parent=1 // pred_region
      _
    $region21: #{tpu_custom_call.1} parent=1 // pred_fallthru
      _
    // Predicated region
    $region22: #{tpu_custom_call.1} parent=1 // pred_check
      _
    $region23: #{tpu_custom_call.1} parent=1 // pred_check_branch
      %36 = sbr.rel (0) target = $region25
    $region24: #{tpu_custom_call.1} parent=1 // pred_region
      _
    $region25: #{tpu_custom_call.1} parent=1 // pred_fallthru
      _
    // Predicated region
    $region26: #{tpu_custom_call.1} parent=1 // pred_check
      _
    $region27: #{tpu_custom_call.1} parent=1 // pred_check_branch
      %38 = sbr.rel (0) target = $region29
    $region28: #{tpu_custom_call.1} parent=1 // pred_region
      _
    $region29: #{tpu_custom_call.1} parent=1 // pred_fallthru
      _
    // Predicated region
    $region30: #{tpu_custom_call.1} parent=1 // pred_check
      _
    $region31: #{tpu_custom_call.1} parent=1 // pred_check_branch
      %40 = sbr.rel (0) target = $region33
    $region32: #{tpu_custom_call.1} parent=1 // pred_region
      %41 = dma.done [#allocation3], 32
    $region33: #{tpu_custom_call.1} parent=1 // pred_fallthru
      _
    %v42 = vld [vmem:[%s6] sm:$0x1]
    %v43 = vld [vmem:[%s4] sm:$0x3]
    %v45 = vlaneseq
    %v46 = vshrl.u32 %v45, 7
    %v47 = vsub.s32 0, %v46
    %v48 = vrot.slane %v42, %v47
    %v50 = vsub.f32 %v43, %v48
    %v51 = vmul.f32 %v50, 25.0
    %vm52 = vcmask 1041408
    %v53 = vsel %vm52, %v51, -inf
    %54 = vmax.xlane.f32.xlu0 %v53
    %v55 = vpop.xlane.xlu0 %54
    %v56 = vsub.f32 %v51, %v55
    %v57 = vmul.f32 %v56, 1.442695
    %v58 = vpow.pop %v57
    %v59 = vsel %vm52, %v58, 0.0
    %60 = vadd.xlane.f32.xlu0 %v59
    %v61 = vpop.xlane.xlu0 %60
    %v62 = vrcp.pop %v61
    %v63 = vmul.f32 %v58, %v62
    %v64 = vld [vmem:[%s5] sm:$0x3]
    %v65 = vsub.f32 %v64, %v48
    %v66 = vmul.f32 %v65, 25.0
    %v67 = vsel %vm52, %v66, -inf
    %68 = vmax.xlane.f32.xlu0 %v67
    %v69 = vpop.xlane.xlu0 %68
    %v70 = vsub.f32 %v66, %v69
    %v71 = vmul.f32 %v70, 1.442695
    %v72 = vpow.pop %v71
    %v73 = vsel %vm52, %v72, 0.0
    %74 = vadd.xlane.f32.xlu0 %v73
    %v75 = vpop.xlane.xlu0 %74
    %v76 = vrcp.pop %v75
    %v77 = vmul.f32 %v72, %v76
    %v78 = vld [vmem:[#allocation2] sm:$0x3]
    %v79 = vmul.f32 %v78, 10.0
    %v80 = vsel %vm52, %v79, -inf
    %81 = vmax.xlane.f32.xlu0 %v80
    %v82 = vpop.xlane.xlu0 %81
    %v83 = vsub.f32 %v79, %v82
    %v84 = vmul.f32 %v83, 1.442695
    %v85 = vpow.pop %v84
    %v86 = vsel %vm52, %v85, 0.0
    %87 = vadd.xlane.f32.xlu0 %v86
    %v88 = vpop.xlane.xlu0 %87
    %v89 = vlog2.pop %v88
    %v90 = vmul.f32 %v89, 0.6931472
    %v91 = vsub.f32 %v83, %v90
    %v92 = vld [vmem:[%s1] sm:$0x3]
    %v93 = vmul.f32 %v92, 10.0
    %v94 = vsel %vm52, %v93, -inf
    %95 = vmax.xlane.f32.xlu0 %v94
    %v96 = vpop.xlane.xlu0 %95
    %v97 = vsub.f32 %v93, %v96
    %v98 = vmul.f32 %v97, 1.442695
    %v99 = vpow.pop %v98
    %v100 = vsel %vm52, %v99, 0.0
    %101 = vadd.xlane.f32.xlu0 %v100
    %v102 = vpop.xlane.xlu0 %101
    %v103 = vlog2.pop %v102
    %v104 = vmul.f32 %v103, 0.6931472
    %v105 = vsub.f32 %v97, %v104
    %v106 = vld [vmem:[%s2] sm:$0x3]
    %v107 = vmul.f32 %v106, 10.0
    %v108 = vsel %vm52, %v107, -inf
    %109 = vmax.xlane.f32.xlu0 %v108
    %v110 = vpop.xlane.xlu0 %109
    %v111 = vsub.f32 %v107, %v110
    %v112 = vmul.f32 %v111, 1.442695
    %v113 = vpow.pop %v112
    %v114 = vsel %vm52, %v113, 0.0
    %115 = vadd.xlane.f32.xlu0 %v114
    %v116 = vpop.xlane.xlu0 %115
    %v117 = vlog2.pop %v116
    %v118 = vmul.f32 %v117, 0.6931472
    %v119 = vsub.f32 %v111, %v118
    %v120 = vld [vmem:[%s3] sm:$0x3]
    %v121 = vmul.f32 %v120, 10.0
    %v122 = vsel %vm52, %v121, -inf
    %123 = vmax.xlane.f32.xlu0 %v122
    %v124 = vpop.xlane.xlu0 %123
    %v125 = vsub.f32 %v121, %v124
    %v126 = vmul.f32 %v125, 1.442695
    %v127 = vpow.pop %v126
    %v128 = vsel %vm52, %v127, 0.0
    %129 = vadd.xlane.f32.xlu0 %v128
    %v130 = vpop.xlane.xlu0 %129
    %v131 = vlog2.pop %v130
    %v132 = vmul.f32 %v131, 0.6931472
    %v133 = vsub.f32 %v125, %v132
    %v134 = vadd.f32 %v63, %v77
    %v135 = vadd.f32 %v91, %v105
    %v136 = vadd.f32 %v135, %v119
    %v137 = vadd.f32 %v136, %v133
    %v138 = vmul.f32 %v134, %v137
    %v139 = vsel %vm52, %v138, 0.0
    %140 = vadd.xlane.f32.xlu0 %v139
    %v141 = vpop.xlane.xlu0 %140
    %v142 = vmul.f32 %v63, %v91
    %v143 = vsel %vm52, %v142, 0.0
    %144 = vadd.xlane.f32.xlu0 %v143
    %v145 = vpop.xlane.xlu0 %144
    %v146 = vadd.f32 %v145, 0.0
    %v147 = vmul.f32 %v77, %v105
    %v148 = vsel %vm52, %v147, 0.0
    %149 = vadd.xlane.f32.xlu0 %v148
    %v150 = vpop.xlane.xlu0 %149
    %v151 = vadd.f32 %v146, %v150
    %v152 = vsub.f32 %v141, %v151
    %v153 = vsub.f32 0.0, %v152
    %v154 = vsel %vm52, %v153, 0.0
    %v155 = vrot.slane %v154, 4
    %v156 = vadd.f32 %v154, %v155
    %v157 = vrot.slane %v156, 2
    %v158 = vadd.f32 %v156, %v157
    %v159 = vrot.slane %v158, 1
    %v160 = vadd.f32 %v158, %v159
    %v161 = vmul.f32 %v160, 0.083333336
    %vm162 = vcmask 0
    %163 = vst.msk [vmem:[#allocation5] sm:$0x1] %vm162, %v161
    %v164 = vld [vmem:[%s4] sm:$0x3]
    %v165 = vsel %vm52, %v164, 0.0
    %v166 = vrot.slane %v165, 4
    %v167 = vadd.f32 %v165, %v166
    %v168 = vrot.slane %v167, 2
    %v169 = vadd.f32 %v167, %v168
    %v170 = vrot.slane %v169, 1
    %v171 = vadd.f32 %v169, %v170
    %v172 = vld [vmem:[%s5] sm:$0x3]
    %v173 = vsel %vm52, %v172, 0.0
    %v174 = vrot.slane %v173, 4
    %v175 = vadd.f32 %v173, %v174
    %v176 = vrot.slane %v175, 2
    %v177 = vadd.f32 %v175, %v176
    %v178 = vrot.slane %v177, 1
    %v179 = vadd.f32 %v177, %v178
    %v180 = vadd.f32 %v171, %v179
    %v181 = vmul.f32 %v180, 0.25
    %v182 = vmul.f32 %v42, 0.9
    %v183 = vmul.f32 %v181, 0.1
    %v184 = vadd.f32 %v182, %v183
    %185 = vst [vmem:[#allocation6] sm:$0x1] %v184
    // Predicated region
    $region34: #{tpu_custom_call.1} parent=1 // pred_check
      _
    $region35: #{tpu_custom_call.1} parent=1 // pred_check_branch
      %187 = sbr.rel (0) target = $region37
    $region36: #{tpu_custom_call.1} parent=1 // pred_region
      %s189 = ssub.s32 16, 16
      %190 = vsyncadd [#allocation4], %s189
      %s192 = sshll.u32 [#allocation5], 4
      %s193 = int_to_ptr.vmem [resolvable:$true] %s192
      %195 = dma.vmem_to_hbm [thread:$0]  %s193, 16, %s7, [#allocation4]
    $region37: #{tpu_custom_call.1} parent=1 // pred_fallthru
      _
    // Predicated region
    $region38: #{tpu_custom_call.1} parent=1 // pred_check
      _
    $region39: #{tpu_custom_call.1} parent=1 // pred_check_branch
      %197 = sbr.rel (0) target = $region41
    $region40: #{tpu_custom_call.1} parent=1 // pred_region
      %s199 = ssub.s32 16, 16
      %200 = vsyncadd [#allocation7], %s199
      %s202 = sshll.u32 [#allocation6], 4
      %s203 = int_to_ptr.vmem [resolvable:$true] %s202
      %205 = dma.vmem_to_hbm [thread:$0]  %s203, 16, %s8, [#allocation7]
    $region41: #{tpu_custom_call.1} parent=1 // pred_fallthru
      _
    // Predicated region
    $region42: #{tpu_custom_call.1} parent=1 // pred_check
      _
    $region43: #{tpu_custom_call.1} parent=1 // pred_check_branch
      %207 = sbr.rel (0) target = $region45
    $region44: #{tpu_custom_call.1} parent=1 // pred_region
      %208 = dma.done [#allocation4], 16
    $region45: #{tpu_custom_call.1} parent=1 // pred_fallthru
      _
    // Predicated region
    $region46: #{tpu_custom_call.1} parent=1 // pred_check
      _
    $region47: #{tpu_custom_call.1} parent=1 // pred_check_branch
      %210 = sbr.rel (0) target = $region49
    $region48: #{tpu_custom_call.1} parent=1 // pred_region
      %211 = dma.done [#allocation7], 16
    $region49: #{tpu_custom_call.1} parent=1 // pred_fallthru
      _
    %212 = vsyncpa [#allocation3], 1
    %213 = vsyncpa [#allocation4], 1
    %214 = vsyncpa [#allocation7], 1

</llo_original>
